<compile_context>
chip_gen: v7x
topology: tpu7x:2x2x1
jax: 0.10.0
libtpu: 0.0.40
codegen_flags: <defaults>
</compile_context>

<pallas_src>
import functools

import jax
import jax.numpy as jnp
from jax.experimental import pallas as pl
from jax.experimental.pallas import tpu as pltpu


def _cdiv(a, b):
    return (a + b - 1) // b


def _round_up(a, b):
    return ((a + b - 1) // b) * b


def _sublane(dtype):
    itemsize = jnp.dtype(dtype).itemsize
    if itemsize >= 4:
        return 8
    if itemsize == 2:
        return 16
    return 32


def _tpu_vmem_plan():
    """Per-generation VMEM plan.

    Returns (planning_budget_bytes, vmem_limit_bytes, dual_tensorcore).
    """
    cap = None
    try:
        cap = int(pltpu.get_tpu_info().vmem_capacity_bytes)
    except Exception:
        cap = None
    kind = ""
    try:
        kind = jax.devices()[0].device_kind.lower()
    except Exception:
        pass
    mib = 1024 * 1024
    small_vmem = ("v7" in kind) or ("7x" in kind) or (
        cap is not None and cap <= 64 * mib)
    if cap is None or cap <= 0:
        cap = 64 * mib if small_vmem else 128 * mib
    if small_vmem:
        # v7x: 64 MiB VMEM per TensorCore, 2 TCs per chip.
        cap = min(cap, 64 * mib)
        budget = min(48 * mib, (cap * 3) // 4)
    else:
        # v5e / v6e (and v4/v5p): 128 MiB physical VMEM per core.
        budget = min(96 * mib, (cap * 3) // 4)
    vmem_limit = min(cap, budget + 8 * mib)
    return budget, vmem_limit, small_vmem


# ---------------------------------------------------------------------------
# Kernels
# ---------------------------------------------------------------------------

def _linear_resident_kernel(x_ref, w_ref, o_ref):
    # Weight block is the full (K, N) matrix, DMA'd once and kept resident.
    o_ref[...] = jnp.dot(
        x_ref[...], w_ref[...], preferred_element_type=jnp.float32
    ).astype(o_ref.dtype)


def _linear_tiled_kernel(x_ref, w_ref, o_ref, acc_ref):
    # Fallback for very large weights: 3-D grid (M, N, K) with the reduction
    # axis last and an fp32 accumulator held in VMEM scratch.
    @pl.when(pl.program_id(2) == 0)
    def _():
        acc_ref[...] = jnp.zeros_like(acc_ref)

    acc_ref[...] += jnp.dot(
        x_ref[...], w_ref[...], preferred_element_type=jnp.float32
    )

    @pl.when(pl.program_id(2) == pl.num_programs(2) - 1)
    def _():
        o_ref[...] = acc_ref[...].astype(o_ref.dtype)


# ---------------------------------------------------------------------------
# Wrapper
# ---------------------------------------------------------------------------

@functools.partial(jax.jit, static_argnames=("proj_dim", "n_comp", "allow_bf16"))
def linear_model_forward(x, w_t, proj_dim, n_comp, allow_bf16=False):
    """x: (..., input_dim); w_t: (input_dim, n_comp*proj_dim).

    Returns (..., proj_dim, n_comp), matching the PyTorch module's forward.
    """
    x_shape = x.shape
    input_dim = x_shape[-1]
    out_dim = n_comp * proj_dim
    assert w_t.shape == (input_dim, out_dim)

    out_dtype = x.dtype

    x2d = x.reshape(-1, input_dim)
    if allow_bf16:
        # Optional reduced-precision operand path (~3x MXU throughput, half the
        # HBM/VMEM traffic). Accumulation stays fp32 via preferred_element_type.
        x2d = x2d.astype(jnp.bfloat16)
        w_t = w_t.astype(jnp.bfloat16)

    M, K = x2d.shape
    N = out_dim

    x_item = jnp.dtype(x2d.dtype).itemsize
    w_item = jnp.dtype(w_t.dtype).itemsize
    o_item = jnp.dtype(out_dtype).itemsize
    sub = _sublane(x2d.dtype)

    budget, vmem_limit, dual_tc = _tpu_vmem_plan()

    cost = pl.CostEstimate(
        flops=2 * M * N * K,
        transcendentals=0,
        bytes_accessed=x_item * M * K + w_item * K * N + o_item * M * N,
    )

    # Lane-dense output width for the resident path.
    n_res = _round_up(N, 128)
    weight_bytes_res = 2 * K * n_res * w_item        # double-buffered weight
    per_row = 2 * (K * x_item + n_res * o_item)      # double-buffered x / out
    use_resident = weight_bytes_res + sub * per_row <= budget

    if use_resident:
        # ------------------------------------------------------------------
        # Fast path: full (K, N) weight resident in VMEM, 1-D grid over M.
        # ------------------------------------------------------------------
        w_res = w_t
        if n_res != N:
            # Pad the output-feature dim to a multiple of 128 so every output
            # store is a full, unmasked lane-dense vst (weight is small here).
            w_res = jnp.pad(w_t, ((0, 0), (0, n_res - N)))

        tm_cap = (budget - weight_bytes_res) // per_row
        tm_cap = max(sub, (tm_cap // sub) * sub)

        if M <= sub:
            tm = M  # block dim equals the full array dim -> always legal
        else:
            tm_align = (M // sub) * sub  # largest aligned tile not exceeding M
            tm = max(sub, min(2048, tm_cap, tm_align))
            if dual_tc:
                # Ensure >= 2 grid steps so both v7x TensorCores get work.
                tm = max(sub, min(tm, _round_up(_cdiv(M, 2), sub)))
        grid_m = _cdiv(M, tm)

        y2d = pl.pallas_call(
            _linear_resident_kernel,
            out_shape=jax.ShapeDtypeStruct((M, n_res), out_dtype),
            grid_spec=pltpu.PrefetchScalarGridSpec(
                num_scalar_prefetch=0,
                grid=(grid_m,),
                in_specs=[
                    pl.BlockSpec((tm, K), lambda i: (i, 0)),
                    pl.BlockSpec((K, n_res), lambda i: (0, 0)),  # resident W
                ],
                out_specs=pl.BlockSpec((tm, n_res), lambda i: (i, 0)),
            ),
            compiler_params=pltpu.CompilerParams(
                dimension_semantics=("parallel",),
                vmem_limit_bytes=int(vmem_limit),
            ),
            cost_estimate=cost,
        )(x2d, w_res)
        if n_res != N:
            y2d = y2d[:, :N]
    else:
        # ------------------------------------------------------------------
        # Fallback: weight too large for VMEM -> tiled K reduction.
        # Only the reduction dim K needs explicit zero padding (garbage there
        # would corrupt the accumulation); partial M / N boundary blocks rely
        # on Pallas masking the out-of-bounds stores.
        # ------------------------------------------------------------------
        tm = M if M <= sub else max(sub, min(512, (M // sub) * sub))
        tn = N if N <= 128 else max(128, min(512, (N // 128) * 128))
        tk = min(1024, _round_up(K, 128))
        K_pad = _round_up(K, tk)
        if K_pad != K:
            x2d = jnp.pad(x2d, ((0, 0), (0, K_pad - K)))
            w_t = jnp.pad(w_t, ((0, K_pad - K), (0, 0)))

        y2d = pl.pallas_call(
            _linear_tiled_kernel,
            out_shape=jax.ShapeDtypeStruct((M, N), out_dtype),
            grid_spec=pltpu.PrefetchScalarGridSpec(
                num_scalar_prefetch=0,
                grid=(_cdiv(M, tm), _cdiv(N, tn), K_pad // tk),
                in_specs=[
                    pl.BlockSpec((tm, tk), lambda i, j, k: (i, k)),
                    pl.BlockSpec((tk, tn), lambda i, j, k: (k, j)),
                ],
                out_specs=pl.BlockSpec((tm, tn), lambda i, j, k: (i, j)),
                scratch_shapes=[pltpu.VMEM((tm, tn), jnp.float32)],
            ),
            compiler_params=pltpu.CompilerParams(
                dimension_semantics=("parallel", "parallel", "arbitrary"),
                vmem_limit_bytes=int(vmem_limit),
            ),
            cost_estimate=cost,
        )(x2d, w_t)

    return y2d.reshape(*x_shape[:-1], proj_dim, n_comp)


# ---------------------------------------------------------------------------
# Demo / correctness check
# ---------------------------------------------------------------------------

if __name__ == "__main__":
    # Small shapes consistent with the module.
    input_dim, proj_dim, n_comp = 32, 16, 8  # out_features = 128

    key = jax.random.PRNGKey(0)
    kx, kw, kx2 = jax.random.split(key, 3)

    # Deterministic init like nn.Linear's default: weight (out_features,
    # in_features) ~ U(-1/sqrt(in), 1/sqrt(in)); we store W^T.
    bound = 1.0 / (input_dim ** 0.5)
    w = jax.random.uniform(
        kw, (n_comp * proj_dim, input_dim), dtype=jnp.float32,
        minval=-bound, maxval=bound,
    )
    w_t = w.T  # (input_dim, n_comp*proj_dim)

    # Case 1: nicely aligned batch*seq.
    batch, seq = 2, 8
    x = jax.random.normal(kx, (batch, seq, input_dim), dtype=jnp.float32)
    out = linear_model_forward(x, w_t, proj_dim=proj_dim, n_comp=n_comp)
    out = jax.block_until_ready(out)
    ref = (x.reshape(-1, input_dim) @ w_t).reshape(batch, seq, proj_dim, n_comp)
    assert out.shape == (batch, seq, proj_dim, n_comp)
    assert jnp.allclose(out, ref, atol=1e-5, rtol=1e-5)

    # Case 2: M not a multiple of the sublane tile (exercises the masked
    # partial boundary block instead of pad/slice).
    batch2, seq2 = 3, 5  # M = 15
    x2 = jax.random.normal(kx2, (batch2, seq2, input_dim), dtype=jnp.float32)
    out2 = linear_model_forward(x2, w_t, proj_dim=proj_dim, n_comp=n_comp)
    out2 = jax.block_until_ready(out2)
    ref2 = (x2.reshape(-1, input_dim) @ w_t).reshape(
        batch2, seq2, proj_dim, n_comp)
    assert out2.shape == (batch2, seq2, proj_dim, n_comp)
    assert jnp.allclose(out2, ref2, atol=1e-5, rtol=1e-5)

    print("KERNEL_OK")
</pallas_src>

<mosaic_0001>
module attributes {stable_mosaic.version = 11 : i64} {
  func.func @_linear_resident_kernel(%arg0: i32, %arg1: memref<16x32xf32, #tpu.memory_space<vmem>>, %arg2: memref<32x128xf32, #tpu.memory_space<vmem>>, %arg3: memref<16x128xf32, #tpu.memory_space<vmem>>) attributes {dimension_semantics = [#tpu.dimension_semantics<parallel>], iteration_bounds = array<i64: 1>, scalar_prefetch = 0 : i64, scratch_operands = 0 : i64, tpu.core_type = #tpu.core_type<tc>, window_params = [{transform_indices = @transform_0, window_bounds = array<i64: 16, 32>}, {pipeline_mode = #tpu.pipeline_mode<synchronous>, transform_indices = @transform_1, window_bounds = array<i64: 32, 128>}, {transform_indices = @transform_2, window_bounds = array<i64: 16, 128>}]} {
    %c0 = arith.constant 0 : index
    %c0_0 = arith.constant 0 : index
    %0 = vector.load %arg1[%c0, %c0_0] : memref<16x32xf32, #tpu.memory_space<vmem>>, vector<16x32xf32>
    %c0_1 = arith.constant 0 : index
    %c0_2 = arith.constant 0 : index
    %1 = vector.load %arg2[%c0_1, %c0_2] : memref<32x128xf32, #tpu.memory_space<vmem>>, vector<32x128xf32>
    %cst = arith.constant dense<0.000000e+00> : vector<16x128xf32>
    %2 = tpu.matmul %0, %1, %cst {dimension_numbers = #tpu.dot_dimension_numbers<[1], [0], [0], [1], [0, 0, 1, 1], [], []>} : vector<16x32xf32>, vector<32x128xf32>, vector<16x128xf32> -> vector<16x128xf32>
    %c0_3 = arith.constant 0 : index
    %c0_4 = arith.constant 0 : index
    %3 = vector.load %arg3[%c0_3, %c0_4] : memref<16x128xf32, #tpu.memory_space<vmem>>, vector<16x128xf32>
    tpu.vector_store %arg3[%c0_3, %c0_4], %2 {strides = array<i32>} : memref<16x128xf32, #tpu.memory_space<vmem>>, vector<16x128xf32>,
    return
  }
  func.func @transform_0(%arg0: i32) -> (i32, i32) {
    %c0_i32 = arith.constant 0 : i32
    %c0_i32_0 = arith.constant 0 : i32
    return %arg0, %c0_i32 : i32, i32
  }
  func.func @transform_1(%arg0: i32) -> (i32, i32) {
    %c0_i32 = arith.constant 0 : i32
    %c0_i32_0 = arith.constant 0 : i32
    %c0_i32_1 = arith.constant 0 : i32
    return %c0_i32, %c0_i32_0 : i32, i32
  }
  func.func @transform_2(%arg0: i32) -> (i32, i32) {
    %c0_i32 = arith.constant 0 : i32
    %c0_i32_0 = arith.constant 0 : i32
    return %arg0, %c0_i32 : i32, i32
  }
}

</mosaic_0001>

<llo_original>
// kernel: linear_model_forward.1
$region0: #{linear_model_forward.1}
  #allocation0 [shape = 'u32[]', space=smem, size = 0x4, offset = 0x4, fixed_abs, tag = 'smem constant byte address 0x4 - core index']
  #allocation1 [shape = 'u32[144,128]{1,0:T(1,128)}', space=vmem, size = 0x12000, scoped, tag = 'internal scratch']
  %s0 = inlined_call_operand.hbm [shape: f32[16,32], index: 0, kind: input, shape index: {}]
  %s1 = inlined_call_operand.hbm [shape: f32[32,128], index: 1, kind: input, shape index: {}]
  %s2 = inlined_call_operand.hbm [shape: f32[16,128], index: 2, kind: output, shape index: {}]
  %s3 = sld [smem:[#allocation0]]
  $region26: #{linear_model_forward.1} parent=0
    _
  %s5 = ssub.s32 1, %s3
  %s6 = scalar_select 0, %s5, %s3
  $region1: #{linear_model_forward.1} parent=0
    #allocation2 [shape = 'u8[8192]{0}', space=vmem, size = 0x2000, scoped, tag = 'input window, operand 0, single buffered']
    #allocation3 [shape = 's32[1]{0}', space=sflag, size = 0x4, scoped, tag = 'scoped memory for linear_model_forward.1']
    #allocation4 [shape = 's32[1]{0}', space=sflag, size = 0x4, scoped, tag = 'scoped memory for linear_model_forward.1']
    #allocation5 [shape = 'u8[16384]{0}', space=vmem, size = 0x4000, scoped, tag = 'input window, operand 1, single buffered']
    #allocation6 [shape = 's32[1]{0}', space=sflag, size = 0x4, scoped, tag = 'scoped memory for linear_model_forward.1']
    #allocation7 [shape = 'u8[8192]{0}', space=vmem, size = 0x2000, scoped, tag = 'output window, operand 0, single buffered']
    %7 = vsyncpa [#allocation3], 0
    %8 = vsyncpa [#allocation6], 0
    %9 = vsyncpa [#allocation4], 0
    // Predicated region
    $region2: #{linear_model_forward.1} parent=1 // pred_check
      _
    $region3: #{linear_model_forward.1} parent=1 // pred_check_branch
      %11 = sbr.rel (0) target = $region5
    $region4: #{linear_model_forward.1} parent=1 // pred_region
      %s13 = ssub.s32 256, 256
      %14 = vsyncadd [#allocation3], %s13
      %s15 = sshll.u32 [#allocation2], 4
      %s16 = int_to_ptr.vmem [resolvable:$true] %s15
      %21 = dma.hbm_to_vmem [thread:$0]  %s0, 256, %s16, [#allocation3], 128, 128, 8
    $region5: #{linear_model_forward.1} parent=1 // pred_fallthru
      _
    // Predicated region
    $region6: #{linear_model_forward.1} parent=1 // pred_check
      _
    $region7: #{linear_model_forward.1} parent=1 // pred_check_branch
      %23 = sbr.rel (0) target = $region9
    $region8: #{linear_model_forward.1} parent=1 // pred_region
      %s25 = ssub.s32 512, 512
      %26 = vsyncadd [#allocation6], %s25
      %s27 = sshll.u32 [#allocation5], 4
      %s28 = int_to_ptr.vmem [resolvable:$true] %s27
      %33 = dma.hbm_to_vmem [thread:$0]  %s1, 512, %s28, [#allocation6], 128, 128, 8
    $region9: #{linear_model_forward.1} parent=1 // pred_fallthru
      _
    // Predicated region
    $region10: #{linear_model_forward.1} parent=1 // pred_check
      _
    $region11: #{linear_model_forward.1} parent=1 // pred_check_branch
      %35 = sbr.rel (0) target = $region13
    $region12: #{linear_model_forward.1} parent=1 // pred_region
      %36 = dma.done [#allocation3], 256
    $region13: #{linear_model_forward.1} parent=1 // pred_fallthru
      _
    // Predicated region
    $region14: #{linear_model_forward.1} parent=1 // pred_check
      _
    $region15: #{linear_model_forward.1} parent=1 // pred_check_branch
      %38 = sbr.rel (0) target = $region17
    $region16: #{linear_model_forward.1} parent=1 // pred_region
      %39 = dma.done [#allocation6], 512
    $region17: #{linear_model_forward.1} parent=1 // pred_fallthru
      _
    %v40 = vld [vmem:[#allocation2] sm:$0xff]
    %v41 = vld [vmem:[#allocation2 + $0x8] sm:$0xff]
    %v42 = vld [vmem:[#allocation5] sm:$0xff]
    %v43 = vld [vmem:[#allocation5 + $0x8] sm:$0xff]
    %v44 = vld [vmem:[#allocation5 + $0x10] sm:$0xff]
    %v45 = vld [vmem:[#allocation5 + $0x18] sm:$0xff]
    %vm46 = vcmask 261120
    %v48 = vsel %vm46, %v40, 0
    %v51 = vsel %vm46, %v41, 0
    %53 = vmatprep.subr.mxu0 0.0
    %54 = vmatpush1.msra.mxu0 %v42
    %55 = vmatprep.subr.mxu0 0.0
    %56 = vmatpush1.msra.mxu0 %v43
    %57 = vmatprep.subr.mxu0 0.0
    %58 = vmatpush1.msra.mxu0 %v44
    %59 = vmatprep.subr.mxu0 0.0
    %60 = vmatpush1.msra.mxu0 %v45
    %61 = vmatprep.subr.mxu0 0.0
    %62 = vmatpush1.msra.mxu0 0.0
    %63 = vmatprep.subr.mxu0 0.0
    %64 = vmatpush1.msra.mxu0 0.0
    %65 = vmatprep.subr.mxu0 0.0
    %66 = vmatpush1.msra.mxu0 0.0
    %67 = vmatprep.subr.mxu0 0.0
    %68 = vmatpush1.msra.mxu0 0.0
    %69 = vmatprep.subr.mxu0 0.0
    %70 = vmatpush1.msra.mxu0 0.0
    %71 = vmatprep.subr.mxu0 0.0
    %72 = vmatpush1.msra.mxu0 0.0
    %73 = vmatprep.subr.mxu0 0.0
    %74 = vmatpush1.msra.mxu0 0.0
    %75 = vmatprep.subr.mxu0 0.0
    %76 = vmatpush1.msra.mxu0 0.0
    %77 = vmatprep.subr.mxu0 0.0
    %78 = vmatpush1.msra.mxu0 0.0
    %79 = vmatprep.subr.mxu0 0.0
    %80 = vmatpush1.msra.mxu0 0.0
    %81 = vmatprep.subr.mxu0 0.0
    %82 = vmatpush1.msra.mxu0 0.0
    %83 = vmatprep.subr.mxu0 0.0
    %84 = vmatpush1.msra.mxu0 0.0
    %85 = vmatprep.subr.mxu0 0.0
    %86 = vmatpush1.msra.mxu0 0.0
    %87 = vmatprep.subr.mxu0 0.0
    %88 = vmatpush1.msra.mxu0 0.0
    %89 = vmatprep.subr.mxu0 0.0
    %90 = vmatpush1.msra.mxu0 0.0
    %91 = vmatprep.subr.mxu0 0.0
    %92 = vmatpush1.msra.mxu0 0.0
    %93 = vmatprep.subr.mxu0 0.0
    %94 = vmatpush1.msra.mxu0 0.0
    %95 = vmatprep.subr.mxu0 0.0
    %96 = vmatpush1.msra.mxu0 0.0
    %97 = vmatprep.subr.mxu0 0.0
    %98 = vmatpush1.msra.mxu0 0.0
    %99 = vmatprep.subr.mxu0 0.0
    %100 = vmatpush1.msra.mxu0 0.0
    %101 = vmatprep.subr.mxu0 0.0
    %102 = vmatpush1.msra.mxu0 0.0
    %103 = vmatprep.subr.mxu0 0.0
    %104 = vmatpush1.msra.mxu0 0.0
    %105 = vmatprep.subr.mxu0 0.0
    %106 = vmatpush1.msra.mxu0 0.0
    %107 = vmatprep.subr.mxu0 0.0
    %108 = vmatpush1.msra.mxu0 0.0
    %109 = vmatprep.subr.mxu0 0.0
    %110 = vmatpush1.msra.mxu0 0.0
    %111 = vmatprep.subr.mxu0 0.0
    %112 = vmatpush1.msra.mxu0 0.0
    %113 = vmatprep.subr.mxu0 0.0
    %114 = vmatpush1.msra.mxu0 0.0
    %115 = vmatprep.subr.mxu0 0.0
    %116 = vmatpush1.msra.mxu0 0.0
    %117 = vmatprep.mubr.f32.mxu0 0.0
    %118 = vmatmul.mubr.f32.gmra.mrb[0].mxu0 %v48
    %v119 = vpop.f32.mrb[0].mxu0
    %v120 = vadd.f32 0.0, %v119
    %v121 = vpop.f32.mrb[0].mxu0
    %122 = vmatprep.mubr.f32.mxu0 0.0
    %123 = vmatmul.mubr.f32.gmra.mrb[0].mxu0 %v51
    %v124 = vpop.f32.mrb[0].mxu0
    %v125 = vadd.f32 0.0, %v124
    %v126 = vpop.f32.mrb[0].mxu0
    %127 = vdwg.mxu0
    %128 = vst [vmem:[#allocation7] sm:$0xff] %v120
    %129 = vst [vmem:[#allocation7 + $0x8] sm:$0xff] %v125
    // Predicated region
    $region18: #{linear_model_forward.1} parent=1 // pred_check
      _
    $region19: #{linear_model_forward.1} parent=1 // pred_check_branch
      %131 = sbr.rel (0) target = $region21
    $region20: #{linear_model_forward.1} parent=1 // pred_region
      %s133 = ssub.s32 256, 256
      %134 = vsyncadd [#allocation4], %s133
      %s135 = sshll.u32 [#allocation7], 4
      %s136 = int_to_ptr.vmem [resolvable:$true] %s135
      %141 = dma.vmem_to_hbm [thread:$0]  %s136, 256, %s2, [#allocation4], 128, 128, 8
    $region21: #{linear_model_forward.1} parent=1 // pred_fallthru
      _
    // Predicated region
    $region22: #{linear_model_forward.1} parent=1 // pred_check
      _
    $region23: #{linear_model_forward.1} parent=1 // pred_check_branch
      %143 = sbr.rel (0) target = $region25
    $region24: #{linear_model_forward.1} parent=1 // pred_region
      %144 = dma.done [#allocation4], 256
    $region25: #{linear_model_forward.1} parent=1 // pred_fallthru
      _
    %145 = vsyncpa [#allocation3], 1
    %146 = vsyncpa [#allocation6], 1
    %147 = vsyncpa [#allocation4], 1

</llo_original>
